<compile_context>
chip_gen: v7x
topology: tpu7x:2x2x1
jax: 0.10.0
libtpu: 0.0.40
codegen_flags: <defaults>
</compile_context>

<pallas_src>
import jax
import jax.numpy as jnp
from jax import lax
from jax.experimental import pallas as pl
from jax.experimental.pallas import tpu as pltpu


def _round_up(x, m):
    return ((x + m - 1) // m) * m


def _vmem_limit_bytes():
    """Generation-aware scoped-VMEM limit (half of physical, capped at 64 MiB)."""
    try:
        cap = pltpu.get_tpu_info().vmem_capacity_bytes
    except Exception:
        cap = 64 * 1024 * 1024  # conservative fallback == v7x per-TC VMEM
    return min(cap // 2, 64 * 1024 * 1024)


_VMEM_LIMIT = _vmem_limit_bytes()
# Per-grid-step byte cost per mask element: int8 mask x2 pipeline buffers (~2 B) plus
# ~3 live f32 intermediates (mask_f32 / d2 / dist*mask, ~12 B).  Budget a quarter of the
# scoped limit for the step working set (double-buffered inputs + headroom).
_BYTES_PER_MASK_ELEM = 14
_STEP_BUDGET_ELEMS = max(128 * 128, (_VMEM_LIMIT // 4) // _BYTES_PER_MASK_ELEM)
_TM_CAP = 512   # row-tile cap (multiple of 32 -> int8 sublane packing stays aligned)
_TN_CAP = 512   # column-tile cap (multiple of 128 -> lane-dense)
_K = 8          # contraction depth: 3 plane coords + |a|^2 + 1, zero-padded to 8


def _geo_consistency_kernel(pw1_ref, pw2t_ref, mask_ref, sum_ref, cnt_ref):
    """Blocks: pw1 (bt,tm,8) f32 augmented, pw2t (bt,8,tn) f32 augmented, mask (bt,tm,tn) int8.

    Outputs: lane-dense (bt,1,tn) partial masked-distance sums and mask counts, resident
    across the column-tile grid axis (axis 2) only.
    """
    j = pl.program_id(2)

    @pl.when(j == 0)
    def _init():
        sum_ref[...] = jnp.zeros_like(sum_ref)
        cnt_ref[...] = jnp.zeros_like(cnt_ref)

    mask = mask_ref[...].astype(jnp.float32)          # (bt, tm, tn), already 0/1 int8

    # Augmented quadratic form: one batched MXU matmul gives |a-b|^2 directly
    # (lhs row = [a, |a|^2, 1, 0..], rhs col = [-2b, 1, |b|^2, 0..]).
    dn = (((2,), (1,)), ((0,), (0,)))
    d2 = lax.dot_general(pw1_ref[...], pw2t_ref[...], dn,
                         preferred_element_type=jnp.float32)   # (bt, tm, tn)
    dist = jnp.sqrt(jnp.maximum(d2, 0.0))                      # EUP sqrt + 1 VALU max
    masked = dist * mask                                       # 1 VALU mul

    # Row reductions on the (otherwise ~idle) MXU: ones(1,tm) @ X  ->  (bt, 1, tn).
    bt_blk, tm_blk, _ = mask.shape
    ones_row = jnp.ones((bt_blk, 1, tm_blk), jnp.float32)
    sum_ref[...] += lax.dot_general(ones_row, masked, dn,
                                    preferred_element_type=jnp.float32)
    cnt_ref[...] += lax.dot_general(ones_row, mask, dn,
                                    preferred_element_type=jnp.float32)


@jax.jit
def geo_consistency_loss(planes1, planes2, rot, tran, gt_corr, loss_weight):
    """planes1/planes2: (B,N,3), rot: (B,3,3), tran: (B,3), gt_corr: (B,N,N) bool/0-1."""
    B, N, _ = planes1.shape
    f32 = jnp.float32
    planes1 = planes1.astype(f32)
    planes2 = planes2.astype(f32)
    rot = rot.astype(f32)
    tran = tran.astype(f32)

    # --- get_plane_params_in_global, hoisted out of the kernel (cheap O(B*N*3) XLA work) ---
    flip = jnp.array([1.0, -1.0, -1.0], f32)
    p1f = planes1 * flip
    end = jnp.einsum("bjk,bnk->bnj", rot, p1f) + tran[:, None, :]
    bvec = end - tran[:, None, :]                         # == end - start
    a_dot_b = jnp.sum(end * bvec, axis=-1, keepdims=True)
    bnorm = jnp.sqrt(jnp.sum(bvec * bvec, axis=-1, keepdims=True))
    pw1 = (a_dot_b / (bnorm + 1e-5) ** 2) * bvec          # (B, N, 3) view-1 planes, world frame
    pw2 = planes2 * flip                                  # (B, N, 3) view-2 planes, y/z flipped

    # --- augmented MXU operands: lhs @ rhs^T == |a-b|^2, no per-element adds in-kernel ---
    n1 = jnp.sum(pw1 * pw1, axis=-1, keepdims=True)       # (B, N, 1)
    n2 = jnp.sum(pw2 * pw2, axis=-1, keepdims=True)       # (B, N, 1)
    ones = jnp.ones_like(n1)
    lhs = jnp.concatenate([pw1, n1, ones], axis=-1)                 # (B, N, 5)
    rhs = jnp.concatenate([-2.0 * pw2, ones, n2], axis=-1)          # (B, N, 5)
    lhs = jnp.pad(lhs, ((0, 0), (0, 0), (0, _K - 5)))               # (B, N, 8)
    rhs_t = jnp.pad(jnp.transpose(rhs, (0, 2, 1)),
                    ((0, 0), (0, _K - 5), (0, 0)))                  # (B, 8, N)

    # 0/1 int8 mask: 1 byte/element of HBM+VMEM traffic, no in-kernel compare needed.
    mask = gt_corr.astype(jnp.int8)                        # (B, N, N)

    # --- tiling: lane-dense columns (128x), 32-aligned rows (int8 sublane packing) ---
    cols = _round_up(N, 128)
    tn = min(cols, _TN_CAP)
    cols = _round_up(cols, tn)
    rows = _round_up(N, 32)
    tm = min(rows, _TM_CAP)
    rows = _round_up(rows, tm)

    # Batch folding amortizes the ~0.35us per-grid-step overhead for small N, capped so the
    # "parallel" batch axis keeps >=2 grid steps (v7x 2-TC) and the step fits the VMEM budget.
    bt = max(1, min(_STEP_BUDGET_ELEMS // (tm * tn), (B + 1) // 2, B))
    b_pad = _round_up(B, bt)

    # Zero padding is correctness-neutral: padded mask entries are 0 and padded plane rows /
    # columns produce d2 == 0, so neither the masked sum nor the count changes.
    lhs = jnp.pad(lhs, ((0, b_pad - B), (0, rows - N), (0, 0)))
    rhs_t = jnp.pad(rhs_t, ((0, b_pad - B), (0, 0), (0, cols - N)))
    mask = jnp.pad(mask, ((0, b_pad - B), (0, rows - N), (0, cols - N)))

    nbt = b_pad // bt
    nrt = rows // tm
    nct = cols // tn

    msum, mcnt = pl.pallas_call(
        _geo_consistency_kernel,
        out_shape=(jax.ShapeDtypeStruct((b_pad * nrt, 1, tn), f32),
                   jax.ShapeDtypeStruct((b_pad * nrt, 1, tn), f32)),
        grid=(nbt, nrt, nct),
        in_specs=[
            pl.BlockSpec((bt, tm, _K), lambda b, r, j: (b, r, 0)),
            pl.BlockSpec((bt, _K, tn), lambda b, r, j: (b, 0, j)),
            pl.BlockSpec((bt, tm, tn), lambda b, r, j: (b, r, j)),
        ],
        out_specs=(
            pl.BlockSpec((bt, 1, tn), lambda b, r, j: (b * nrt + r, 0, 0)),
            pl.BlockSpec((bt, 1, tn), lambda b, r, j: (b * nrt + r, 0, 0)),
        ),
        compiler_params=pltpu.CompilerParams(
            dimension_semantics=("parallel", "parallel", "arbitrary"),
            vmem_limit_bytes=_VMEM_LIMIT),
    )(lhs, rhs_t, mask)

    # Masked mean + NaN guard (empty correspondence set -> 0), scalar glue in JAX.
    losses = jnp.sum(msum) / jnp.sum(mcnt)
    losses = jnp.where(jnp.isnan(losses), 0.0, losses)
    return {"geo_consistency_loss": loss_weight * losses}


# ----------------------- pure-JAX reference (for correctness check) -----------------------
def _reference_loss(planes1, planes2, rot, tran, gt_corr, loss_weight):
    flip = jnp.array([1.0, -1.0, -1.0], jnp.float32)
    p1f = planes1 * flip
    end = jnp.einsum("bjk,bnk->bnj", rot, p1f) + tran[:, None, :]
    bvec = end - tran[:, None, :]
    scale = jnp.sum(end * bvec, -1, keepdims=True) / (
        jnp.sqrt(jnp.sum(bvec * bvec, -1, keepdims=True)) + 1e-5) ** 2
    pw1 = scale * bvec
    pw2 = planes2 * flip
    dist = jnp.sqrt(jnp.sum((pw1[:, :, None, :] - pw2[:, None, :, :]) ** 2, -1))
    m = gt_corr.astype(jnp.float32)
    loss = jnp.sum(dist * m) / jnp.sum(m)
    loss = jnp.where(jnp.isnan(loss), 0.0, loss)
    return loss_weight * loss


def _quat_to_rotmat(q):
    q = q / jnp.linalg.norm(q, axis=-1, keepdims=True)
    w, x, y, z = q[..., 0], q[..., 1], q[..., 2], q[..., 3]
    return jnp.stack([
        jnp.stack([1 - 2 * (y * y + z * z), 2 * (x * y - z * w), 2 * (x * z + y * w)], -1),
        jnp.stack([2 * (x * y + z * w), 1 - 2 * (x * x + z * z), 2 * (y * z - x * w)], -1),
        jnp.stack([2 * (x * z - y * w), 2 * (y * z + x * w), 1 - 2 * (x * x + y * y)], -1),
    ], axis=-2)


if __name__ == "__main__":
    key = jax.random.PRNGKey(0)
    B, N = 4, 16   # batch of image pairs, padded plane count per image, 3 plane params
    k1, k2, k3, k4 = jax.random.split(key, 4)
    planes1 = jax.random.normal(k1, (B, N, 3), jnp.float32)
    planes2 = jax.random.normal(k2, (B, N, 3), jnp.float32)
    rot = _quat_to_rotmat(jax.random.normal(k3, (B, 4), jnp.float32))   # camera rotations
    tran = jax.random.normal(k4, (B, 3), jnp.float32)                   # camera positions
    # deterministic gt correspondence mask: plane i <-> plane i for the first 5 planes
    ii = jnp.arange(N)
    gt_corr = jnp.broadcast_to((ii[:, None] == ii[None, :]) & (ii[:, None] < 5), (B, N, N))
    loss_weight = 0.5

    out = geo_consistency_loss(planes1, planes2, rot, tran, gt_corr, loss_weight)
    loss = jax.block_until_ready(out["geo_consistency_loss"])

    ref = _reference_loss(planes1, planes2, rot, tran, gt_corr, loss_weight)
    assert jnp.allclose(loss, ref, rtol=1e-4, atol=1e-5), (float(loss), float(ref))
    print("KERNEL_OK")
</pallas_src>

<mosaic_0001>
module attributes {stable_mosaic.version = 11 : i64} {
  func.func @_geo_consistency_kernel(%arg0: i32, %arg1: i32, %arg2: i32, %arg3: memref<2x32x8xf32, #tpu.memory_space<vmem>>, %arg4: memref<2x8x128xf32, #tpu.memory_space<vmem>>, %arg5: memref<2x32x128xi8, #tpu.memory_space<vmem>>, %arg6: memref<2x1x128xf32, #tpu.memory_space<vmem>>, %arg7: memref<2x1x128xf32, #tpu.memory_space<vmem>>) attributes {dimension_semantics = [#tpu.dimension_semantics<parallel>, #tpu.dimension_semantics<parallel>, #tpu.dimension_semantics<arbitrary>], iteration_bounds = array<i64: 2, 1, 1>, scalar_prefetch = 0 : i64, scratch_operands = 0 : i64, tpu.core_type = #tpu.core_type<tc>, window_params = [{transform_indices = @transform_0, window_bounds = array<i64: 2, 32, 8>}, {transform_indices = @transform_1, window_bounds = array<i64: 2, 8, 128>}, {transform_indices = @transform_2, window_bounds = array<i64: 2, 32, 128>}, {transform_indices = @transform_3, window_bounds = array<i64: 2, 1, 128>}, {transform_indices = @transform_4, window_bounds = array<i64: 2, 1, 128>}]} {
    %c0_i32 = arith.constant 0 : i32
    %0 = arith.cmpi eq, %arg2, %c0_i32 : i32
    %1 = arith.extui %0 : i1 to i32
    %c0_i32_0 = arith.constant 0 : i32
    %2 = arith.cmpi ne, %1, %c0_i32_0 : i32
    scf.if %2 {
      %cst_25 = arith.constant 0.000000e+00 : f32
      %21 = vector.broadcast %cst_25 : f32 to vector<2x1x128xf32>
      %c0_26 = arith.constant 0 : index
      %c0_27 = arith.constant 0 : index
      %c0_28 = arith.constant 0 : index
      %22 = vector.load %arg6[%c0_26, %c0_27, %c0_28] : memref<2x1x128xf32, #tpu.memory_space<vmem>>, vector<2x1x128xf32>
      tpu.vector_store %arg6[%c0_26, %c0_27, %c0_28], %21 {strides = array<i32>} : memref<2x1x128xf32, #tpu.memory_space<vmem>>, vector<2x1x128xf32>,
      %cst_29 = arith.constant 0.000000e+00 : f32
      %23 = vector.broadcast %cst_29 : f32 to vector<2x1x128xf32>
      %c0_30 = arith.constant 0 : index
      %c0_31 = arith.constant 0 : index
      %c0_32 = arith.constant 0 : index
      %24 = vector.load %arg7[%c0_30, %c0_31, %c0_32] : memref<2x1x128xf32, #tpu.memory_space<vmem>>, vector<2x1x128xf32>
      tpu.vector_store %arg7[%c0_30, %c0_31, %c0_32], %23 {strides = array<i32>} : memref<2x1x128xf32, #tpu.memory_space<vmem>>, vector<2x1x128xf32>,
    } else {
    }
    %c0 = arith.constant 0 : index
    %c0_1 = arith.constant 0 : index
    %c0_2 = arith.constant 0 : index
    %3 = vector.load %arg5[%c0, %c0_1, %c0_2] : memref<2x32x128xi8, #tpu.memory_space<vmem>>, vector<2x32x128xi8>
    %4 = arith.sitofp %3 : vector<2x32x128xi8> to vector<2x32x128xf32>
    %c0_3 = arith.constant 0 : index
    %c0_4 = arith.constant 0 : index
    %c0_5 = arith.constant 0 : index
    %5 = vector.load %arg3[%c0_3, %c0_4, %c0_5] : memref<2x32x8xf32, #tpu.memory_space<vmem>>, vector<2x32x8xf32>
    %c0_6 = arith.constant 0 : index
    %c0_7 = arith.constant 0 : index
    %c0_8 = arith.constant 0 : index
    %6 = vector.load %arg4[%c0_6, %c0_7, %c0_8] : memref<2x8x128xf32, #tpu.memory_space<vmem>>, vector<2x8x128xf32>
    %cst = arith.constant dense<0.000000e+00> : vector<2x32x128xf32>
    %7 = tpu.matmul %5, %6, %cst {dimension_numbers = #tpu.dot_dimension_numbers<[2], [1], [1], [2], [0, 0, 0, 1, 1, 2], [0], [0]>} : vector<2x32x8xf32>, vector<2x8x128xf32>, vector<2x32x128xf32> -> vector<2x32x128xf32>
    %cst_9 = arith.constant 0.000000e+00 : f32
    %8 = vector.broadcast %cst_9 : f32 to vector<2x32x128xf32>
    %9 = arith.maximumf %7, %8 : vector<2x32x128xf32>
    %10 = math.sqrt %9 : vector<2x32x128xf32>
    %11 = arith.mulf %10, %4 : vector<2x32x128xf32>
    %cst_10 = arith.constant 1.000000e+00 : f32
    %12 = vector.broadcast %cst_10 : f32 to vector<2x1x32xf32>
    %c0_11 = arith.constant 0 : index
    %c0_12 = arith.constant 0 : index
    %c0_13 = arith.constant 0 : index
    %13 = vector.load %arg6[%c0_11, %c0_12, %c0_13] : memref<2x1x128xf32, #tpu.memory_space<vmem>>, vector<2x1x128xf32>
    %cst_14 = arith.constant dense<0.000000e+00> : vector<2x1x128xf32>
    %14 = tpu.matmul %12, %11, %cst_14 {dimension_numbers = #tpu.dot_dimension_numbers<[2], [1], [1], [2], [0, 0, 0, 1, 1, 2], [0], [0]>} : vector<2x1x32xf32>, vector<2x32x128xf32>, vector<2x1x128xf32> -> vector<2x1x128xf32>
    %15 = arith.addf %13, %14 : vector<2x1x128xf32>
    %c0_15 = arith.constant 0 : index
    %c0_16 = arith.constant 0 : index
    %c0_17 = arith.constant 0 : index
    %16 = vector.load %arg6[%c0_15, %c0_16, %c0_17] : memref<2x1x128xf32, #tpu.memory_space<vmem>>, vector<2x1x128xf32>
    tpu.vector_store %arg6[%c0_15, %c0_16, %c0_17], %15 {strides = array<i32>} : memref<2x1x128xf32, #tpu.memory_space<vmem>>, vector<2x1x128xf32>,
    %c0_18 = arith.constant 0 : index
    %c0_19 = arith.constant 0 : index
    %c0_20 = arith.constant 0 : index
    %17 = vector.load %arg7[%c0_18, %c0_19, %c0_20] : memref<2x1x128xf32, #tpu.memory_space<vmem>>, vector<2x1x128xf32>
    %cst_21 = arith.constant dense<0.000000e+00> : vector<2x1x128xf32>
    %18 = tpu.matmul %12, %4, %cst_21 {dimension_numbers = #tpu.dot_dimension_numbers<[2], [1], [1], [2], [0, 0, 0, 1, 1, 2], [0], [0]>} : vector<2x1x32xf32>, vector<2x32x128xf32>, vector<2x1x128xf32> -> vector<2x1x128xf32>
    %19 = arith.addf %17, %18 : vector<2x1x128xf32>
    %c0_22 = arith.constant 0 : index
    %c0_23 = arith.constant 0 : index
    %c0_24 = arith.constant 0 : index
    %20 = vector.load %arg7[%c0_22, %c0_23, %c0_24] : memref<2x1x128xf32, #tpu.memory_space<vmem>>, vector<2x1x128xf32>
    tpu.vector_store %arg7[%c0_22, %c0_23, %c0_24], %19 {strides = array<i32>} : memref<2x1x128xf32, #tpu.memory_space<vmem>>, vector<2x1x128xf32>,
    return
  }
  func.func @transform_0(%arg0: i32, %arg1: i32, %arg2: i32) -> (i32, i32, i32) {
    %c0_i32 = arith.constant 0 : i32
    %c0_i32_0 = arith.constant 0 : i32
    return %arg0, %arg1, %c0_i32 : i32, i32, i32
  }
  func.func @transform_1(%arg0: i32, %arg1: i32, %arg2: i32) -> (i32, i32, i32) {
    %c0_i32 = arith.constant 0 : i32
    %c0_i32_0 = arith.constant 0 : i32
    return %arg0, %c0_i32, %arg2 : i32, i32, i32
  }
  func.func @transform_2(%arg0: i32, %arg1: i32, %arg2: i32) -> (i32, i32, i32) {
    %c0_i32 = arith.constant 0 : i32
    return %arg0, %arg1, %arg2 : i32, i32, i32
  }
  func.func @transform_3(%arg0: i32, %arg1: i32, %arg2: i32) -> (i32, i32, i32) {
    %c1_i32 = arith.constant 1 : i32
    %0 = arith.muli %arg0, %c1_i32 : i32
    %1 = arith.addi %0, %arg1 : i32
    %c0_i32 = arith.constant 0 : i32
    %c0_i32_0 = arith.constant 0 : i32
    %c0_i32_1 = arith.constant 0 : i32
    return %1, %c0_i32, %c0_i32_0 : i32, i32, i32
  }
  func.func @transform_4(%arg0: i32, %arg1: i32, %arg2: i32) -> (i32, i32, i32) {
    %c1_i32 = arith.constant 1 : i32
    %0 = arith.muli %arg0, %c1_i32 : i32
    %1 = arith.addi %0, %arg1 : i32
    %c0_i32 = arith.constant 0 : i32
    %c0_i32_0 = arith.constant 0 : i32
    %c0_i32_1 = arith.constant 0 : i32
    return %1, %c0_i32, %c0_i32_0 : i32, i32, i32
  }
}

</mosaic_0001>

<llo_original>
// kernel: geo_consistency_loss.1
$region0: #{geo_consistency_loss.1}
  #allocation0 [shape = 'u32[]', space=smem, size = 0x4, offset = 0x4, fixed_abs, tag = 'smem constant byte address 0x4 - core index']
  #allocation1 [shape = 'u32[144,128]{1,0:T(1,128)}', space=vmem, size = 0x12000, scoped, tag = 'internal scratch']
  %s0 = inlined_call_operand.vmem [shape: f32[4,32,8], index: 0, kind: input, shape index: {}]
  %s1 = inlined_call_operand.vmem [shape: f32[4,8,128], index: 1, kind: input, shape index: {}]
  %s2 = inlined_call_operand.vmem [shape: s8[4,32,128], index: 2, kind: input, shape index: {}]
  %s3 = inlined_call_operand.vmem [shape: f32[4,1,128], index: 3, kind: output, shape index: {0}]
  %s4 = inlined_call_operand.vmem [shape: f32[4,1,128], index: 4, kind: output, shape index: {1}]
  %5 = xla_tuple %s3, %s4
  %s6 = sld [smem:[#allocation0]]
  $region57: #{geo_consistency_loss.1} parent=0
    _
  %s8 = ssub.s32 1, %s6
  %s9 = scalar_select 0, %s8, %s6
  loop: start=0, step=1, limit=4
  $region2: #{geo_consistency_loss.1} parent=0 // loop_pre_header
    _
  $region3: #{geo_consistency_loss.1} parent=0 // loop_header
    %s11 = sphi 0, %s15
    %p12 = scmp.ge.s32.totalorder %s11, 4
    %s18 = sphi 0, %s37
    %s19 = sphi 0, %s33
    %s20 = sphi 0, %s29
    %s21 = sphi 0, %s18
    %s22 = sphi 0, %s19
    %s23 = sphi 0, %s20
    %s24 = sphi 0, %s21
    %s25 = sphi 0, %s22
    %s26 = sphi 0, %s23
    %s42 = sphi 0, %s44
    %s45 = sphi 0, %s42
    %s46 = sphi 0, %s45
    %s62 = sphi 0, %s46
    %s70 = sphi 0, %s72
    %s73 = sphi 0, %s70
    %s74 = sphi 0, %s73
    %s90 = sphi 0, %s74
    %s100 = sphi 0, %s102
    %s103 = sphi 0, %s100
    %s104 = sphi 0, %s103
    %s120 = sphi 0, %s104
    %s128 = sphi 0, %s130
    %s131 = sphi 0, %s128
    %s132 = sphi 0, %s131
    %s148 = sphi 0, %s132
    %s156 = sphi 0, %s158
    %s159 = sphi 0, %s156
    %s160 = sphi 0, %s159
    %s176 = sphi 0, %s160
  $region4: #{geo_consistency_loss.1} parent=0 // loop_header_branch
    %14 = sbr.rel (%p12) target = $region8
  $region5: #{geo_consistency_loss.1} parent=0 // loop_body
    %s16 = ssub.s32 %s11, 1
    %s17 = ssub.s32 %s11, 2
    %s27 = sadd.s32 1, %s20
    %p28 = scmp.ge.s32.totalorder %s27, 1
    %s29 = scalar_select %p28, 0, %s27
    %s30 = sadd.s32 1, %s19
    %s31 = scalar_select %p28, %s30, %s19
    %p32 = scmp.ge.s32.totalorder %s31, 1
    %s33 = scalar_select %p32, 0, %s31
    %s34 = sadd.s32 1, %s18
    %s35 = scalar_select %p32, %s34, %s18
    %p36 = scmp.ge.s32.totalorder %s35, 2
    %s37 = scalar_select %p36, 0, %s35
    %s38 = ssub.s32 %s18, %s37
    %s39 = ssub.s32 %s19, %s33
    %s40 = sor.u32 %s38, %s39
    %p41 = scmp.eq.s32.totalorder %s40, 0
    %s43 = sadd.s32 %s42, 1
    %s44 = scalar_select %p41, %s42, %s43
    %p47 = pneg %p41
    %p48 = scmp.eq.s32.totalorder %s11, 1
    %p49 = por %p47, %p48
    %p50 = scmp.ne.s32.totalorder %s42, %s45
    %p51 = scmp.eq.s32.totalorder %s11, 0
    %p52 = por %p50, %p51
    %p53 = scmp.ne.s32.totalorder %s42, %s45
    %p54 = scmp.eq.s32.totalorder %s16, 1
    %p55 = por %p53, %p54
    %p56 = scmp.ne.s32.totalorder %s45, %s46
    %p57 = scmp.eq.s32.totalorder %s16, 0
    %p58 = por %p56, %p57
    %p59 = scmp.ne.s32.totalorder %s45, %s46
    %p60 = scmp.eq.s32.totalorder %s17, 1
    %p61 = por %p59, %p60
    %p63 = scmp.ne.s32.totalorder %s46, %s62
    %p64 = scmp.eq.s32.totalorder %s17, 0
    %p65 = por %p63, %p64
    %s66 = ssub.s32 %s18, %s37
    %s67 = ssub.s32 %s20, %s29
    %s68 = sor.u32 %s66, %s67
    %p69 = scmp.eq.s32.totalorder %s68, 0
    %s71 = sadd.s32 %s70, 1
    %s72 = scalar_select %p69, %s70, %s71
    %p75 = pneg %p69
    %p76 = scmp.eq.s32.totalorder %s11, 1
    %p77 = por %p75, %p76
    %p78 = scmp.ne.s32.totalorder %s70, %s73
    %p79 = scmp.eq.s32.totalorder %s11, 0
    %p80 = por %p78, %p79
    %p81 = scmp.ne.s32.totalorder %s70, %s73
    %p82 = scmp.eq.s32.totalorder %s16, 1
    %p83 = por %p81, %p82
    %p84 = scmp.ne.s32.totalorder %s73, %s74
    %p85 = scmp.eq.s32.totalorder %s16, 0
    %p86 = por %p84, %p85
    %p87 = scmp.ne.s32.totalorder %s73, %s74
    %p88 = scmp.eq.s32.totalorder %s17, 1
    %p89 = por %p87, %p88
    %p91 = scmp.ne.s32.totalorder %s74, %s90
    %p92 = scmp.eq.s32.totalorder %s17, 0
    %p93 = por %p91, %p92
    %s94 = ssub.s32 %s18, %s37
    %s95 = ssub.s32 %s19, %s33
    %s96 = sor.u32 %s94, %s95
    %s97 = ssub.s32 %s20, %s29
    %s98 = sor.u32 %s96, %s97
    %p99 = scmp.eq.s32.totalorder %s98, 0
    %s101 = sadd.s32 %s100, 1
    %s102 = scalar_select %p99, %s100, %s101
    %p105 = pneg %p99
    %p106 = scmp.eq.s32.totalorder %s11, 1
    %p107 = por %p105, %p106
    %p108 = scmp.ne.s32.totalorder %s100, %s103
    %p109 = scmp.eq.s32.totalorder %s11, 0
    %p110 = por %p108, %p109
    %p111 = scmp.ne.s32.totalorder %s100, %s103
    %p112 = scmp.eq.s32.totalorder %s16, 1
    %p113 = por %p111, %p112
    %p114 = scmp.ne.s32.totalorder %s103, %s104
    %p115 = scmp.eq.s32.totalorder %s16, 0
    %p116 = por %p114, %p115
    %p117 = scmp.ne.s32.totalorder %s103, %s104
    %p118 = scmp.eq.s32.totalorder %s17, 1
    %p119 = por %p117, %p118
    %p121 = scmp.ne.s32.totalorder %s104, %s120
    %p122 = scmp.eq.s32.totalorder %s17, 0
    %p123 = por %p121, %p122
    %s124 = sadd.s32 %s18, %s19
    %s125 = sadd.s32 %s37, %s33
    %s126 = ssub.s32 %s124, %s125
    %p127 = scmp.eq.s32.totalorder %s126, 0
    %s129 = sadd.s32 %s128, 1
    %s130 = scalar_select %p127, %s128, %s129
    %p133 = pneg %p127
    %p134 = scmp.eq.s32.totalorder %s11, 1
    %p135 = por %p133, %p134
    %p136 = scmp.ne.s32.totalorder %s128, %s131
    %p137 = scmp.eq.s32.totalorder %s11, 0
    %p138 = por %p136, %p137
    %p139 = scmp.ne.s32.totalorder %s128, %s131
    %p140 = scmp.eq.s32.totalorder %s16, 1
    %p141 = por %p139, %p140
    %p142 = scmp.ne.s32.totalorder %s131, %s132
    %p143 = scmp.eq.s32.totalorder %s16, 0
    %p144 = por %p142, %p143
    %p145 = scmp.ne.s32.totalorder %s131, %s132
    %p146 = scmp.eq.s32.totalorder %s17, 1
    %p147 = por %p145, %p146
    %p149 = scmp.ne.s32.totalorder %s132, %s148
    %p150 = scmp.eq.s32.totalorder %s17, 0
    %p151 = por %p149, %p150
    %s152 = sadd.s32 %s18, %s19
    %s153 = sadd.s32 %s37, %s33
    %s154 = ssub.s32 %s152, %s153
    %p155 = scmp.eq.s32.totalorder %s154, 0
    %s157 = sadd.s32 %s156, 1
    %s158 = scalar_select %p155, %s156, %s157
    %p161 = pneg %p155
    %p162 = scmp.eq.s32.totalorder %s11, 1
    %p163 = por %p161, %p162
    %p164 = scmp.ne.s32.totalorder %s156, %s159
    %p165 = scmp.eq.s32.totalorder %s11, 0
    %p166 = por %p164, %p165
    %p167 = scmp.ne.s32.totalorder %s156, %s159
    %p168 = scmp.eq.s32.totalorder %s16, 1
    %p169 = por %p167, %p168
    %p170 = scmp.ne.s32.totalorder %s159, %s160
    %p171 = scmp.eq.s32.totalorder %s16, 0
    %p172 = por %p170, %p171
    %p173 = scmp.ne.s32.totalorder %s159, %s160
    %p174 = scmp.eq.s32.totalorder %s17, 1
    %p175 = por %p173, %p174
    %p177 = scmp.ne.s32.totalorder %s160, %s176
    %p178 = scmp.eq.s32.totalorder %s17, 0
    %p179 = por %p177, %p178
    %p180 = scmp.le.s32.totalorder 1, %s11
    %p181 = scmp.lt.s32.totalorder %s11, 3
    %p182 = pnand %p180, %p181
    %p183 = pneg %p182
    // Predicated region
    $region9: #{geo_consistency_loss.1} parent=5 // pred_check
      _
    $region10: #{geo_consistency_loss.1} parent=5 // pred_check_branch
      %185 = sbr.rel (%p182) target = $region12
    $region11: #{geo_consistency_loss.1} parent=5 // pred_region
      %s186 = ssub.s32 %s11, 1
    $region12: #{geo_consistency_loss.1} parent=5 // pred_fallthru
      _
    %p187 = scmp.lt.s32.totalorder %s11, 2
    // Predicated region
    $region13: #{geo_consistency_loss.1} parent=5 // pred_check
      %p188 = pneg %p187
    $region14: #{geo_consistency_loss.1} parent=5 // pred_check_branch
      %190 = sbr.rel (%p188) target = $region16
    $region15: #{geo_consistency_loss.1} parent=5 // pred_region
      // Predicated region
      $region17: #{geo_consistency_loss.1} parent=15 // pred_check
        %p191 = pneg %p52
      $region18: #{geo_consistency_loss.1} parent=15 // pred_check_branch
        %193 = sbr.rel (%p191) target = $region20
      $region19: #{geo_consistency_loss.1} parent=15 // pred_region
        %s194 = smul.u32 2, %s18
        %s195 = smul.u32 4, %s19
        %p196 = scmp.lt.s32.totalorder %s194, 3
        %s197 = scalar_select %p196, %s194, 3
        %p198 = scmp.lt.s32.totalorder %s195, 3
        %s199 = scalar_select %p198, %s195, 3
        %s200 = smul.addr %s197, 4
        %s201 = sadd.s32 %s199, %s200
        %s202 = smul.addr %s201, 8
        %s203 = scalar_lea.vmem %s0, %s202
        %s204 = smul.u32 2, %s18
        %s205 = smul.u32 4, %s19
      $region20: #{geo_consistency_loss.1} parent=15 // pred_fallthru
        _
      // Predicated region
      $region21: #{geo_consistency_loss.1} parent=15 // pred_check
        %p206 = pneg %p80
      $region22: #{geo_consistency_loss.1} parent=15 // pred_check_branch
        %208 = sbr.rel (%p206) target = $region24
      $region23: #{geo_consistency_loss.1} parent=15 // pred_region
        %s209 = smul.u32 2, %s18
        %p210 = scmp.lt.s32.totalorder %s209, 3
        %s211 = scalar_select %p210, %s209, 3
        %p212 = scmp.lt.s32.totalorder %s20, 0
        %s213 = scalar_select %p212, %s20, 0
        %s214 = sadd.s32 %s213, %s211
        %s215 = smul.addr %s214, 8
        %s216 = scalar_lea.vmem %s1, %s215
        %s217 = smul.u32 2, %s18
      $region24: #{geo_consistency_loss.1} parent=15 // pred_fallthru
        _
      // Predicated region
      $region25: #{geo_consistency_loss.1} parent=15 // pred_check
        %p218 = pneg %p110
      $region26: #{geo_consistency_loss.1} parent=15 // pred_check_branch
        %220 = sbr.rel (%p218) target = $region28
      $region27: #{geo_consistency_loss.1} parent=15 // pred_region
        %s221 = smul.u32 2, %s18
        %p222 = scmp.lt.s32.totalorder %s221, 3
        %s223 = scalar_select %p222, %s221, 3
        %p224 = scmp.lt.s32.totalorder %s19, 0
        %s225 = scalar_select %p224, %s19, 0
        %p226 = scmp.lt.s32.totalorder %s20, 0
        %s227 = scalar_select %p226, %s20, 0
        %s228 = sadd.s32 %s227, %s225
        %s229 = sadd.s32 %s228, %s223
        %s230 = smul.addr %s229, 8
        %s231 = scalar_lea.vmem %s2, %s230
        %s232 = smul.u32 2, %s18
      $region28: #{geo_consistency_loss.1} parent=15 // pred_fallthru
        _
    $region16: #{geo_consistency_loss.1} parent=5 // pred_fallthru
      _
    %p233 = scmp.le.s32.totalorder 1, %s11
    %p234 = scmp.lt.s32.totalorder %s11, 3
    %p235 = pnand %p233, %p234
    %p236 = pneg %p235
    // Predicated region
    $region29: #{geo_consistency_loss.1} parent=5 // pred_check
      _
    $region30: #{geo_consistency_loss.1} parent=5 // pred_check_branch
      %238 = sbr.rel (%p235) target = $region32
    $region31: #{geo_consistency_loss.1} parent=5 // pred_region
      %s239 = ssub.s32 %s11, 1
      %s240 = smul.u32 2, %s21
      %s241 = smul.u32 4, %s22
      %p242 = scmp.lt.s32.totalorder %s240, 3
      %s243 = scalar_select %p242, %s240, 3
      %p244 = scmp.lt.s32.totalorder %s241, 3
      %s245 = scalar_select %p244, %s241, 3
      %s246 = smul.addr %s243, 4
      %s247 = sadd.s32 %s245, %s246
      %s248 = smul.addr %s247, 8
      %s249 = scalar_lea.vmem %s0, %s248
      %p250 = pneg %p58
      %p251 = pneg %p55
      %s252 = smul.u32 2, %s21
      %p253 = scmp.lt.s32.totalorder %s252, 3
      %s254 = scalar_select %p253, %s252, 3
      %p255 = scmp.lt.s32.totalorder %s23, 0
      %s256 = scalar_select %p255, %s23, 0
      %s257 = sadd.s32 %s256, %s254
      %s258 = smul.addr %s257, 8
      %s259 = scalar_lea.vmem %s1, %s258
      %p260 = pneg %p86
      %p261 = pneg %p83
      %s262 = smul.u32 2, %s21
      %p263 = scmp.lt.s32.totalorder %s262, 3
      %s264 = scalar_select %p263, %s262, 3
      %p265 = scmp.lt.s32.totalorder %s22, 0
      %s266 = scalar_select %p265, %s22, 0
      %p267 = scmp.lt.s32.totalorder %s23, 0
      %s268 = scalar_select %p267, %s23, 0
      %s269 = sadd.s32 %s268, %s266
      %s270 = sadd.s32 %s269, %s264
      %s271 = smul.addr %s270, 8
      %s272 = scalar_lea.vmem %s2, %s271
      %p273 = pneg %p116
      %p274 = pneg %p113
      %p275 = pneg %p144
      %p276 = pneg %p141
      %s277 = sadd.s32 %s21, %s22
      %s278 = smul.u32 2, %s277
      %p279 = scmp.lt.s32.totalorder %s278, 3
      %s280 = scalar_select %p279, %s278, 3
      %s281 = scalar_lea.vmem %s3, %s280
      %p282 = pneg %p172
      %p283 = pneg %p169
      %s284 = sadd.s32 %s21, %s22
      %s285 = smul.u32 2, %s284
      %p286 = scmp.lt.s32.totalorder %s285, 3
      %s287 = scalar_select %p286, %s285, 3
      %s288 = scalar_lea.vmem %s4, %s287
      %s289 = smul.u32 2, %s21
      %s290 = smul.u32 4, %s22
      %p291 = scmp.lt.s32.totalorder %s289, 3
      %s292 = scalar_select %p291, %s289, 3
      %p293 = scmp.lt.s32.totalorder %s290, 3
      %s294 = scalar_select %p293, %s290, 3
      %s295 = smul.addr %s292, 4
      %s296 = sadd.s32 %s294, %s295
      %s297 = smul.addr %s296, 8
      %s298 = scalar_lea.vmem %s0, %s297
      %s299 = smul.u32 2, %s21
      %s300 = smul.u32 4, %s22
      %s301 = smul.u32 2, %s21
      %p302 = scmp.lt.s32.totalorder %s301, 3
      %s303 = scalar_select %p302, %s301, 3
      %p304 = scmp.lt.s32.totalorder %s23, 0
      %s305 = scalar_select %p304, %s23, 0
      %s306 = sadd.s32 %s305, %s303
      %s307 = smul.addr %s306, 8
      %s308 = scalar_lea.vmem %s1, %s307
      %s309 = smul.u32 2, %s21
      %s310 = smul.u32 2, %s21
      %p311 = scmp.lt.s32.totalorder %s310, 3
      %s312 = scalar_select %p311, %s310, 3
      %p313 = scmp.lt.s32.totalorder %s22, 0
      %s314 = scalar_select %p313, %s22, 0
      %p315 = scmp.lt.s32.totalorder %s23, 0
      %s316 = scalar_select %p315, %s23, 0
      %s317 = sadd.s32 %s316, %s314
      %s318 = sadd.s32 %s317, %s312
      %s319 = smul.addr %s318, 8
      %s320 = scalar_lea.vmem %s2, %s319
      %s321 = smul.u32 2, %s21
      %s322 = sadd.s32 %s21, %s22
      %s323 = smul.u32 2, %s322
      %p324 = scmp.lt.s32.totalorder %s323, 3
      %s325 = scalar_select %p324, %s323, 3
      %s326 = scalar_lea.vmem %s3, %s325
      %s327 = sadd.s32 %s21, %s22
      %s328 = smul.u32 2, %s327
      %s329 = sadd.s32 %s21, %s22
      %s330 = smul.u32 2, %s329
      %p331 = scmp.lt.s32.totalorder %s330, 3
      %s332 = scalar_select %p331, %s330, 3
      %s333 = scalar_lea.vmem %s4, %s332
      %s334 = sadd.s32 %s21, %s22
      %s335 = smul.u32 2, %s334
      %p336 = scmp.eq.s32.totalorder %s23, 0
      // Predicated region
      $region33: #{geo_consistency_loss.1} parent=31 // pred_check
        %p337 = pneg %p336
      $region34: #{geo_consistency_loss.1} parent=31 // pred_check_branch
        %339 = sbr.rel (%p337) target = $region36
      $region35: #{geo_consistency_loss.1} parent=31 // pred_region
        %340 = vst [vmem:[%s326] sm:$0x1] 0.0
        %341 = vst [vmem:[%s326 + $0x1] sm:$0x1] 0.0
        %342 = vst [vmem:[%s333] sm:$0x1] 0.0
        %343 = vst [vmem:[%s333 + $0x1] sm:$0x1] 0.0
      $region36: #{geo_consistency_loss.1} parent=31 // pred_fallthru
        _
      %v344 = vld [vmem:[%s320] sm:$0xff]
      %v345 = vld [vmem:[%s320 + $0x8] sm:$0xff]
      %v346 = vunpack.c.0.s8 %v344
      %v347 = vunpack.c.1.s8 %v344
      %v348 = vunpack.c.2.s8 %v344
      %v349 = vunpack.c.3.s8 %v344
      %v350 = vunpack.c.0.s8 %v345
      %v351 = vunpack.c.1.s8 %v345
      %v352 = vunpack.c.2.s8 %v345
      %v353 = vunpack.c.3.s8 %v345
      %v354 = vcvt.s32.f32 %v346
      %v355 = vcvt.s32.f32 %v347
      %v356 = vcvt.s32.f32 %v348
      %v357 = vcvt.s32.f32 %v349
      %v358 = vcvt.s32.f32 %v350
      %v359 = vcvt.s32.f32 %v351
      %v360 = vcvt.s32.f32 %v352
      %v361 = vcvt.s32.f32 %v353
      %v362 = vld [vmem:[%s298] sm:$0xff]
      %v363 = vld [vmem:[%s298 + $0x8] sm:$0xff]
      %v364 = vld [vmem:[%s298 + $0x10] sm:$0xff]
      %v365 = vld [vmem:[%s298 + $0x18] sm:$0xff]
      %v366 = vld [vmem:[%s298 + $0x20] sm:$0xff]
      %v367 = vld [vmem:[%s298 + $0x28] sm:$0xff]
      %v368 = vld [vmem:[%s298 + $0x30] sm:$0xff]
      %v369 = vld [vmem:[%s298 + $0x38] sm:$0xff]
      %v370 = vld [vmem:[%s308] sm:$0xff]
      %v371 = vld [vmem:[%s308 + $0x8] sm:$0xff]
      %vm372 = vcmask 64512
      %v374 = vsel %vm372, %v362, 0
      %v377 = vsel %vm372, %v363, 0
      %v380 = vsel %vm372, %v364, 0
      %v383 = vsel %vm372, %v365, 0
      %385 = vmatprep.subr.mxu0 0.0
      %386 = vmatpush1.msra.mxu0 %v370
      %387 = vmatprep.subr.mxu0 0.0
      %388 = vmatpush1.msra.mxu0 0.0
      %389 = vmatprep.subr.mxu0 0.0
      %390 = vmatpush1.msra.mxu0 0.0
      %391 = vmatprep.subr.mxu0 0.0
      %392 = vmatpush1.msra.mxu0 0.0
      %393 = vmatprep.subr.mxu0 0.0
      %394 = vmatpush1.msra.mxu0 0.0
      %395 = vmatprep.subr.mxu0 0.0
      %396 = vmatpush1.msra.mxu0 0.0
      %397 = vmatprep.subr.mxu0 0.0
      %398 = vmatpush1.msra.mxu0 0.0
      %399 = vmatprep.subr.mxu0 0.0
      %400 = vmatpush1.msra.mxu0 0.0
      %401 = vmatprep.subr.mxu0 0.0
      %402 = vmatpush1.msra.mxu0 0.0
      %403 = vmatprep.subr.mxu0 0.0
      %404 = vmatpush1.msra.mxu0 0.0
      %405 = vmatprep.subr.mxu0 0.0
      %406 = vmatpush1.msra.mxu0 0.0
      %407 = vmatprep.subr.mxu0 0.0
      %408 = vmatpush1.msra.mxu0 0.0
      %409 = vmatprep.subr.mxu0 0.0
      %410 = vmatpush1.msra.mxu0 0.0
      %411 = vmatprep.subr.mxu0 0.0
      %412 = vmatpush1.msra.mxu0 0.0
      %413 = vmatprep.subr.mxu0 0.0
      %414 = vmatpush1.msra.mxu0 0.0
      %415 = vmatprep.subr.mxu0 0.0
      %416 = vmatpush1.msra.mxu0 0.0
      %417 = vmatprep.subr.mxu0 0.0
      %418 = vmatpush1.msra.mxu0 0.0
      %419 = vmatprep.subr.mxu0 0.0
      %420 = vmatpush1.msra.mxu0 0.0
      %421 = vmatprep.subr.mxu0 0.0
      %422 = vmatpush1.msra.mxu0 0.0
      %423 = vmatprep.subr.mxu0 0.0
      %424 = vmatpush1.msra.mxu0 0.0
      %425 = vmatprep.subr.mxu0 0.0
      %426 = vmatpush1.msra.mxu0 0.0
      %427 = vmatprep.subr.mxu0 0.0
      %428 = vmatpush1.msra.mxu0 0.0
      %429 = vmatprep.subr.mxu0 0.0
      %430 = vmatpush1.msra.mxu0 0.0
      %431 = vmatprep.subr.mxu0 0.0
      %432 = vmatpush1.msra.mxu0 0.0
      %433 = vmatprep.subr.mxu0 0.0
      %434 = vmatpush1.msra.mxu0 0.0
      %435 = vmatprep.subr.mxu0 0.0
      %436 = vmatpush1.msra.mxu0 0.0
      %437 = vmatprep.subr.mxu0 0.0
      %438 = vmatpush1.msra.mxu0 0.0
      %439 = vmatprep.subr.mxu0 0.0
      %440 = vmatpush1.msra.mxu0 0.0
      %441 = vmatprep.subr.mxu0 0.0
      %442 = vmatpush1.msra.mxu0 0.0
      %443 = vmatprep.subr.mxu0 0.0
      %444 = vmatpush1.msra.mxu0 0.0
      %445 = vmatprep.subr.mxu0 0.0
      %446 = vmatpush1.msra.mxu0 0.0
      %447 = vmatprep.subr.mxu0 0.0
      %448 = vmatpush1.msra.mxu0 0.0
      %449 = vmatprep.mubr.f32.mxu0 0.0
      %450 = vmatmul.mubr.f32.gmra.mrb[0].mxu0 %v374
      %v451 = vpop.f32.mrb[0].mxu0
      %v452 = vadd.f32 0.0, %v451
      %v453 = vpop.f32.mrb[0].mxu0
      %454 = vmatprep.mubr.f32.mxu0 0.0
      %455 = vmatmul.mubr.f32.gmra.mrb[0].mxu0 %v377
      %v456 = vpop.f32.mrb[0].mxu0
      %v457 = vadd.f32 0.0, %v456
      %v458 = vpop.f32.mrb[0].mxu0
      %459 = vmatprep.mubr.f32.mxu0 0.0
      %460 = vmatmul.mubr.f32.gmra.mrb[0].mxu0 %v380
      %v461 = vpop.f32.mrb[0].mxu0
      %v462 = vadd.f32 0.0, %v461
      %v463 = vpop.f32.mrb[0].mxu0
      %464 = vmatprep.mubr.f32.mxu0 0.0
      %465 = vmatmul.mubr.f32.gmra.mrb[0].mxu0 %v383
      %v466 = vpop.f32.mrb[0].mxu0
      %v467 = vadd.f32 0.0, %v466
      %v468 = vpop.f32.mrb[0].mxu0
      %469 = vdwg.mxu0
      %v471 = vsel %vm372, %v366, 0
      %v474 = vsel %vm372, %v367, 0
      %v477 = vsel %vm372, %v368, 0
      %v480 = vsel %vm372, %v369, 0
      %482 = vmatprep.subr.mxu0 0.0
      %483 = vmatpush1.msra.mxu0 %v371
      %484 = vmatprep.subr.mxu0 0.0
      %485 = vmatpush1.msra.mxu0 0.0
      %486 = vmatprep.subr.mxu0 0.0
      %487 = vmatpush1.msra.mxu0 0.0
      %488 = vmatprep.subr.mxu0 0.0
      %489 = vmatpush1.msra.mxu0 0.0
      %490 = vmatprep.subr.mxu0 0.0
      %491 = vmatpush1.msra.mxu0 0.0
      %492 = vmatprep.subr.mxu0 0.0
      %493 = vmatpush1.msra.mxu0 0.0
      %494 = vmatprep.subr.mxu0 0.0
      %495 = vmatpush1.msra.mxu0 0.0
      %496 = vmatprep.subr.mxu0 0.0
      %497 = vmatpush1.msra.mxu0 0.0
      %498 = vmatprep.subr.mxu0 0.0
      %499 = vmatpush1.msra.mxu0 0.0
      %500 = vmatprep.subr.mxu0 0.0
      %501 = vmatpush1.msra.mxu0 0.0
      %502 = vmatprep.subr.mxu0 0.0
      %503 = vmatpush1.msra.mxu0 0.0
      %504 = vmatprep.subr.mxu0 0.0
      %505 = vmatpush1.msra.mxu0 0.0
      %506 = vmatprep.subr.mxu0 0.0
      %507 = vmatpush1.msra.mxu0 0.0
      %508 = vmatprep.subr.mxu0 0.0
      %509 = vmatpush1.msra.mxu0 0.0
      %510 = vmatprep.subr.mxu0 0.0
      %511 = vmatpush1.msra.mxu0 0.0
      %512 = vmatprep.subr.mxu0 0.0
      %513 = vmatpush1.msra.mxu0 0.0
      %514 = vmatprep.subr.mxu0 0.0
      %515 = vmatpush1.msra.mxu0 0.0
      %516 = vmatprep.subr.mxu0 0.0
      %517 = vmatpush1.msra.mxu0 0.0
      %518 = vmatprep.subr.mxu0 0.0
      %519 = vmatpush1.msra.mxu0 0.0
      %520 = vmatprep.subr.mxu0 0.0
      %521 = vmatpush1.msra.mxu0 0.0
      %522 = vmatprep.subr.mxu0 0.0
      %523 = vmatpush1.msra.mxu0 0.0
      %524 = vmatprep.subr.mxu0 0.0
      %525 = vmatpush1.msra.mxu0 0.0
      %526 = vmatprep.subr.mxu0 0.0
      %527 = vmatpush1.msra.mxu0 0.0
      %528 = vmatprep.subr.mxu0 0.0
      %529 = vmatpush1.msra.mxu0 0.0
      %530 = vmatprep.subr.mxu0 0.0
      %531 = vmatpush1.msra.mxu0 0.0
      %532 = vmatprep.subr.mxu0 0.0
      %533 = vmatpush1.msra.mxu0 0.0
      %534 = vmatprep.subr.mxu0 0.0
      %535 = vmatpush1.msra.mxu0 0.0
      %536 = vmatprep.subr.mxu0 0.0
      %537 = vmatpush1.msra.mxu0 0.0
      %538 = vmatprep.subr.mxu0 0.0
      %539 = vmatpush1.msra.mxu0 0.0
      %540 = vmatprep.subr.mxu0 0.0
      %541 = vmatpush1.msra.mxu0 0.0
      %542 = vmatprep.subr.mxu0 0.0
      %543 = vmatpush1.msra.mxu0 0.0
      %544 = vmatprep.subr.mxu0 0.0
      %545 = vmatpush1.msra.mxu0 0.0
      %546 = vmatprep.mubr.f32.mxu0 0.0
      %547 = vmatmul.mubr.f32.gmra.mrb[0].mxu0 %v471
      %v548 = vpop.f32.mrb[0].mxu0
      %v549 = vadd.f32 0.0, %v548
      %v550 = vpop.f32.mrb[0].mxu0
      %551 = vmatprep.mubr.f32.mxu0 0.0
      %552 = vmatmul.mubr.f32.gmra.mrb[0].mxu0 %v474
      %v553 = vpop.f32.mrb[0].mxu0
      %v554 = vadd.f32 0.0, %v553
      %v555 = vpop.f32.mrb[0].mxu0
      %556 = vmatprep.mubr.f32.mxu0 0.0
      %557 = vmatmul.mubr.f32.gmra.mrb[0].mxu0 %v477
      %v558 = vpop.f32.mrb[0].mxu0
      %v559 = vadd.f32 0.0, %v558
      %v560 = vpop.f32.mrb[0].mxu0
      %561 = vmatprep.mubr.f32.mxu0 0.0
      %562 = vmatmul.mubr.f32.gmra.mrb[0].mxu0 %v480
      %v563 = vpop.f32.mrb[0].mxu0
      %v564 = vadd.f32 0.0, %v563
      %v565 = vpop.f32.mrb[0].mxu0
      %566 = vdwg.mxu0
      %v567 = vmax.f32 %v452, 0.0
      %v568 = vmax.f32 %v457, 0.0
      %v569 = vmax.f32 %v462, 0.0
      %v570 = vmax.f32 %v467, 0.0
      %v571 = vmax.f32 %v549, 0.0
      %v572 = vmax.f32 %v554, 0.0
      %v573 = vmax.f32 %v559, 0.0
      %v574 = vmax.f32 %v564, 0.0
      %v575 = vrsqrt.pop %v567
      %v576 = vmul.f32 %v567, %v575
      %vm577 = vcmp.eq.f32.partialorder %v567, inf
      %v578 = vsel %vm577, %v567, %v576
      %vm579 = vcmp.eq.f32.partialorder %v567, 0.0
      %v580 = vand.u32 %v567, 2147483648
      %v581 = vsel %vm579, %v580, %v578
      %v582 = vrsqrt.pop %v568
      %v583 = vmul.f32 %v568, %v582
      %vm584 = vcmp.eq.f32.partialorder %v568, inf
      %v585 = vsel %vm584, %v568, %v583
      %vm586 = vcmp.eq.f32.partialorder %v568, 0.0
      %v587 = vand.u32 %v568, 2147483648
      %v588 = vsel %vm586, %v587, %v585
      %v589 = vrsqrt.pop %v569
      %v590 = vmul.f32 %v569, %v589
      %vm591 = vcmp.eq.f32.partialorder %v569, inf
      %v592 = vsel %vm591, %v569, %v590
      %vm593 = vcmp.eq.f32.partialorder %v569, 0.0
      %v594 = vand.u32 %v569, 2147483648
      %v595 = vsel %vm593, %v594, %v592
      %v596 = vrsqrt.pop %v570
      %v597 = vmul.f32 %v570, %v596
      %vm598 = vcmp.eq.f32.partialorder %v570, inf
      %v599 = vsel %vm598, %v570, %v597
      %vm600 = vcmp.eq.f32.partialorder %v570, 0.0
      %v601 = vand.u32 %v570, 2147483648
      %v602 = vsel %vm600, %v601, %v599
      %v603 = vrsqrt.pop %v571
      %v604 = vmul.f32 %v571, %v603
      %vm605 = vcmp.eq.f32.partialorder %v571, inf
      %v606 = vsel %vm605, %v571, %v604
      %vm607 = vcmp.eq.f32.partialorder %v571, 0.0
      %v608 = vand.u32 %v571, 2147483648
      %v609 = vsel %vm607, %v608, %v606
      %v610 = vrsqrt.pop %v572
      %v611 = vmul.f32 %v572, %v610
      %vm612 = vcmp.eq.f32.partialorder %v572, inf
      %v613 = vsel %vm612, %v572, %v611
      %vm614 = vcmp.eq.f32.partialorder %v572, 0.0
      %v615 = vand.u32 %v572, 2147483648
      %v616 = vsel %vm614, %v615, %v613
      %v617 = vrsqrt.pop %v573
      %v618 = vmul.f32 %v573, %v617
      %vm619 = vcmp.eq.f32.partialorder %v573, inf
      %v620 = vsel %vm619, %v573, %v618
      %vm621 = vcmp.eq.f32.partialorder %v573, 0.0
      %v622 = vand.u32 %v573, 2147483648
      %v623 = vsel %vm621, %v622, %v620
      %v624 = vrsqrt.pop %v574
      %v625 = vmul.f32 %v574, %v624
      %vm626 = vcmp.eq.f32.partialorder %v574, inf
      %v627 = vsel %vm626, %v574, %v625
      %vm628 = vcmp.eq.f32.partialorder %v574, 0.0
      %v629 = vand.u32 %v574, 2147483648
      %v630 = vsel %vm628, %v629, %v627
      %v631 = vmul.f32 %v581, %v354
      %v632 = vmul.f32 %v588, %v355
      %v633 = vmul.f32 %v595, %v356
      %v634 = vmul.f32 %v602, %v357
      %v635 = vmul.f32 %v609, %v358
      %v636 = vmul.f32 %v616, %v359
      %v637 = vmul.f32 %v623, %v360
      %v638 = vmul.f32 %v630, %v361
      %v639 = vld [vmem:[%s326] sm:$0x1]
      %v640 = vld [vmem:[%s326 + $0x1] sm:$0x1]
      %vm641 = vcmask 261120
      %v643 = vsel %vm641, 1.0, 0
      %645 = vmatprep.subr.mxu0 0.0
      %646 = vmatpush1.msra.mxu0 %v631
      %647 = vmatprep.subr.mxu0 0.0
      %648 = vmatpush1.msra.mxu0 %v632
      %649 = vmatprep.subr.mxu0 0.0
      %650 = vmatpush1.msra.mxu0 %v633
      %651 = vmatprep.subr.mxu0 0.0
      %652 = vmatpush1.msra.mxu0 %v634
      %653 = vmatprep.subr.mxu0 0.0
      %654 = vmatpush1.msra.mxu0 0.0
      %655 = vmatprep.subr.mxu0 0.0
      %656 = vmatpush1.msra.mxu0 0.0
      %657 = vmatprep.subr.mxu0 0.0
      %658 = vmatpush1.msra.mxu0 0.0
      %659 = vmatprep.subr.mxu0 0.0
      %660 = vmatpush1.msra.mxu0 0.0
      %661 = vmatprep.subr.mxu0 0.0
      %662 = vmatpush1.msra.mxu0 0.0
      %663 = vmatprep.subr.mxu0 0.0
      %664 = vmatpush1.msra.mxu0 0.0
      %665 = vmatprep.subr.mxu0 0.0
      %666 = vmatpush1.msra.mxu0 0.0
      %667 = vmatprep.subr.mxu0 0.0
      %668 = vmatpush1.msra.mxu0 0.0
      %669 = vmatprep.subr.mxu0 0.0
      %670 = vmatpush1.msra.mxu0 0.0
      %671 = vmatprep.subr.mxu0 0.0
      %672 = vmatpush1.msra.mxu0 0.0
      %673 = vmatprep.subr.mxu0 0.0
      %674 = vmatpush1.msra.mxu0 0.0
      %675 = vmatprep.subr.mxu0 0.0
      %676 = vmatpush1.msra.mxu0 0.0
      %677 = vmatprep.subr.mxu0 0.0
      %678 = vmatpush1.msra.mxu0 0.0
      %679 = vmatprep.subr.mxu0 0.0
      %680 = vmatpush1.msra.mxu0 0.0
      %681 = vmatprep.subr.mxu0 0.0
      %682 = vmatpush1.msra.mxu0 0.0
      %683 = vmatprep.subr.mxu0 0.0
      %684 = vmatpush1.msra.mxu0 0.0
      %685 = vmatprep.subr.mxu0 0.0
      %686 = vmatpush1.msra.mxu0 0.0
      %687 = vmatprep.subr.mxu0 0.0
      %688 = vmatpush1.msra.mxu0 0.0
      %689 = vmatprep.subr.mxu0 0.0
      %690 = vmatpush1.msra.mxu0 0.0
      %691 = vmatprep.subr.mxu0 0.0
      %692 = vmatpush1.msra.mxu0 0.0
      %693 = vmatprep.subr.mxu0 0.0
      %694 = vmatpush1.msra.mxu0 0.0
      %695 = vmatprep.subr.mxu0 0.0
      %696 = vmatpush1.msra.mxu0 0.0
      %697 = vmatprep.subr.mxu0 0.0
      %698 = vmatpush1.msra.mxu0 0.0
      %699 = vmatprep.subr.mxu0 0.0
      %700 = vmatpush1.msra.mxu0 0.0
      %701 = vmatprep.subr.mxu0 0.0
      %702 = vmatpush1.msra.mxu0 0.0
      %703 = vmatprep.subr.mxu0 0.0
      %704 = vmatpush1.msra.mxu0 0.0
      %705 = vmatprep.subr.mxu0 0.0
      %706 = vmatpush1.msra.mxu0 0.0
      %707 = vmatprep.subr.mxu0 0.0
      %708 = vmatpush1.msra.mxu0 0.0
      %709 = vmatprep.mubr.f32.mxu0 0.0
      %710 = vmatmul.mubr.f32.gmra.mrb[0].mxu0 %v643
      %v711 = vpop.f32.mrb[0].mxu0
      %v712 = vadd.f32 0.0, %v711
      %v713 = vpop.f32.mrb[0].mxu0
      %714 = vdwg.mxu0
      %715 = vmatprep.subr.mxu0 0.0
      %716 = vmatpush1.msra.mxu0 %v635
      %717 = vmatprep.subr.mxu0 0.0
      %718 = vmatpush1.msra.mxu0 %v636
      %719 = vmatprep.subr.mxu0 0.0
      %720 = vmatpush1.msra.mxu0 %v637
      %721 = vmatprep.subr.mxu0 0.0
      %722 = vmatpush1.msra.mxu0 %v638
      %723 = vmatprep.subr.mxu0 0.0
      %724 = vmatpush1.msra.mxu0 0.0
      %725 = vmatprep.subr.mxu0 0.0
      %726 = vmatpush1.msra.mxu0 0.0
      %727 = vmatprep.subr.mxu0 0.0
      %728 = vmatpush1.msra.mxu0 0.0
      %729 = vmatprep.subr.mxu0 0.0
      %730 = vmatpush1.msra.mxu0 0.0
      %731 = vmatprep.subr.mxu0 0.0
      %732 = vmatpush1.msra.mxu0 0.0
      %733 = vmatprep.subr.mxu0 0.0
      %734 = vmatpush1.msra.mxu0 0.0
      %735 = vmatprep.subr.mxu0 0.0
      %736 = vmatpush1.msra.mxu0 0.0
      %737 = vmatprep.subr.mxu0 0.0
      %738 = vmatpush1.msra.mxu0 0.0
      %739 = vmatprep.subr.mxu0 0.0
      %740 = vmatpush1.msra.mxu0 0.0
      %741 = vmatprep.subr.mxu0 0.0
      %742 = vmatpush1.msra.mxu0 0.0
      %743 = vmatprep.subr.mxu0 0.0
      %744 = vmatpush1.msra.mxu0 0.0
      %745 = vmatprep.subr.mxu0 0.0
      %746 = vmatpush1.msra.mxu0 0.0
      %747 = vmatprep.subr.mxu0 0.0
      %748 = vmatpush1.msra.mxu0 0.0
      %749 = vmatprep.subr.mxu0 0.0
      %750 = vmatpush1.msra.mxu0 0.0
      %751 = vmatprep.subr.mxu0 0.0
      %752 = vmatpush1.msra.mxu0 0.0
      %753 = vmatprep.subr.mxu0 0.0
      %754 = vmatpush1.msra.mxu0 0.0
      %755 = vmatprep.subr.mxu0 0.0
      %756 = vmatpush1.msra.mxu0 0.0
      %757 = vmatprep.subr.mxu0 0.0
      %758 = vmatpush1.msra.mxu0 0.0
      %759 = vmatprep.subr.mxu0 0.0
      %760 = vmatpush1.msra.mxu0 0.0
      %761 = vmatprep.subr.mxu0 0.0
      %762 = vmatpush1.msra.mxu0 0.0
      %763 = vmatprep.subr.mxu0 0.0
      %764 = vmatpush1.msra.mxu0 0.0
      %765 = vmatprep.subr.mxu0 0.0
      %766 = vmatpush1.msra.mxu0 0.0
      %767 = vmatprep.subr.mxu0 0.0
      %768 = vmatpush1.msra.mxu0 0.0
      %769 = vmatprep.subr.mxu0 0.0
      %770 = vmatpush1.msra.mxu0 0.0
      %771 = vmatprep.subr.mxu0 0.0
      %772 = vmatpush1.msra.mxu0 0.0
      %773 = vmatprep.subr.mxu0 0.0
      %774 = vmatpush1.msra.mxu0 0.0
      %775 = vmatprep.subr.mxu0 0.0
      %776 = vmatpush1.msra.mxu0 0.0
      %777 = vmatprep.subr.mxu0 0.0
      %778 = vmatpush1.msra.mxu0 0.0
      %779 = vmatprep.mubr.f32.mxu0 0.0
      %780 = vmatmul.mubr.f32.gmra.mrb[0].mxu0 %v643
      %v781 = vpop.f32.mrb[0].mxu0
      %v782 = vadd.f32 0.0, %v781
      %v783 = vpop.f32.mrb[0].mxu0
      %784 = vdwg.mxu0
      %v785 = vadd.f32 %v639, %v712
      %v786 = vadd.f32 %v640, %v782
      %787 = vst [vmem:[%s326] sm:$0x1] %v785
      %788 = vst [vmem:[%s326 + $0x1] sm:$0x1] %v786
      %v789 = vld [vmem:[%s333] sm:$0x1]
      %v790 = vld [vmem:[%s333 + $0x1] sm:$0x1]
      %791 = vmatprep.subr.mxu0 0.0
      %792 = vmatpush1.msra.mxu0 %v354
      %793 = vmatprep.subr.mxu0 0.0
      %794 = vmatpush1.msra.mxu0 %v355
      %795 = vmatprep.subr.mxu0 0.0
      %796 = vmatpush1.msra.mxu0 %v356
      %797 = vmatprep.subr.mxu0 0.0
      %798 = vmatpush1.msra.mxu0 %v357
      %799 = vmatprep.subr.mxu0 0.0
      %800 = vmatpush1.msra.mxu0 0.0
      %801 = vmatprep.subr.mxu0 0.0
      %802 = vmatpush1.msra.mxu0 0.0
      %803 = vmatprep.subr.mxu0 0.0
      %804 = vmatpush1.msra.mxu0 0.0
      %805 = vmatprep.subr.mxu0 0.0
      %806 = vmatpush1.msra.mxu0 0.0
      %807 = vmatprep.subr.mxu0 0.0
      %808 = vmatpush1.msra.mxu0 0.0
      %809 = vmatprep.subr.mxu0 0.0
      %810 = vmatpush1.msra.mxu0 0.0
      %811 = vmatprep.subr.mxu0 0.0
      %812 = vmatpush1.msra.mxu0 0.0
      %813 = vmatprep.subr.mxu0 0.0
      %814 = vmatpush1.msra.mxu0 0.0
      %815 = vmatprep.subr.mxu0 0.0
      %816 = vmatpush1.msra.mxu0 0.0
      %817 = vmatprep.subr.mxu0 0.0
      %818 = vmatpush1.msra.mxu0 0.0
      %819 = vmatprep.subr.mxu0 0.0
      %820 = vmatpush1.msra.mxu0 0.0
      %821 = vmatprep.subr.mxu0 0.0
      %822 = vmatpush1.msra.mxu0 0.0
      %823 = vmatprep.subr.mxu0 0.0
      %824 = vmatpush1.msra.mxu0 0.0
      %825 = vmatprep.subr.mxu0 0.0
      %826 = vmatpush1.msra.mxu0 0.0
      %827 = vmatprep.subr.mxu0 0.0
      %828 = vmatpush1.msra.mxu0 0.0
      %829 = vmatprep.subr.mxu0 0.0
      %830 = vmatpush1.msra.mxu0 0.0
      %831 = vmatprep.subr.mxu0 0.0
      %832 = vmatpush1.msra.mxu0 0.0
      %833 = vmatprep.subr.mxu0 0.0
      %834 = vmatpush1.msra.mxu0 0.0
      %835 = vmatprep.subr.mxu0 0.0
      %836 = vmatpush1.msra.mxu0 0.0
      %837 = vmatprep.subr.mxu0 0.0
      %838 = vmatpush1.msra.mxu0 0.0
      %839 = vmatprep.subr.mxu0 0.0
      %840 = vmatpush1.msra.mxu0 0.0
      %841 = vmatprep.subr.mxu0 0.0
      %842 = vmatpush1.msra.mxu0 0.0
      %843 = vmatprep.subr.mxu0 0.0
      %844 = vmatpush1.msra.mxu0 0.0
      %845 = vmatprep.subr.mxu0 0.0
      %846 = vmatpush1.msra.mxu0 0.0
      %847 = vmatprep.subr.mxu0 0.0
      %848 = vmatpush1.msra.mxu0 0.0
      %849 = vmatprep.subr.mxu0 0.0
      %850 = vmatpush1.msra.mxu0 0.0
      %851 = vmatprep.subr.mxu0 0.0
      %852 = vmatpush1.msra.mxu0 0.0
      %853 = vmatprep.subr.mxu0 0.0
      %854 = vmatpush1.msra.mxu0 0.0
      %855 = vmatprep.mubr.f32.mxu0 0.0
      %856 = vmatmul.mubr.f32.gmra.mrb[0].mxu0 %v643
      %v857 = vpop.f32.mrb[0].mxu0
      %v858 = vadd.f32 0.0, %v857
      %v859 = vpop.f32.mrb[0].mxu0
      %860 = vdwg.mxu0
      %861 = vmatprep.subr.mxu0 0.0
      %862 = vmatpush1.msra.mxu0 %v358
      %863 = vmatprep.subr.mxu0 0.0
      %864 = vmatpush1.msra.mxu0 %v359
      %865 = vmatprep.subr.mxu0 0.0
      %866 = vmatpush1.msra.mxu0 %v360
      %867 = vmatprep.subr.mxu0 0.0
      %868 = vmatpush1.msra.mxu0 %v361
      %869 = vmatprep.subr.mxu0 0.0
      %870 = vmatpush1.msra.mxu0 0.0
      %871 = vmatprep.subr.mxu0 0.0
      %872 = vmatpush1.msra.mxu0 0.0
      %873 = vmatprep.subr.mxu0 0.0
      %874 = vmatpush1.msra.mxu0 0.0
      %875 = vmatprep.subr.mxu0 0.0
      %876 = vmatpush1.msra.mxu0 0.0
      %877 = vmatprep.subr.mxu0 0.0
      %878 = vmatpush1.msra.mxu0 0.0
      %879 = vmatprep.subr.mxu0 0.0
      %880 = vmatpush1.msra.mxu0 0.0
      %881 = vmatprep.subr.mxu0 0.0
      %882 = vmatpush1.msra.mxu0 0.0
      %883 = vmatprep.subr.mxu0 0.0
      %884 = vmatpush1.msra.mxu0 0.0
      %885 = vmatprep.subr.mxu0 0.0
      %886 = vmatpush1.msra.mxu0 0.0
      %887 = vmatprep.subr.mxu0 0.0
      %888 = vmatpush1.msra.mxu0 0.0
      %889 = vmatprep.subr.mxu0 0.0
      %890 = vmatpush1.msra.mxu0 0.0
      %891 = vmatprep.subr.mxu0 0.0
      %892 = vmatpush1.msra.mxu0 0.0
      %893 = vmatprep.subr.mxu0 0.0
      %894 = vmatpush1.msra.mxu0 0.0
      %895 = vmatprep.subr.mxu0 0.0
      %896 = vmatpush1.msra.mxu0 0.0
      %897 = vmatprep.subr.mxu0 0.0
      %898 = vmatpush1.msra.mxu0 0.0
      %899 = vmatprep.subr.mxu0 0.0
      %900 = vmatpush1.msra.mxu0 0.0
      %901 = vmatprep.subr.mxu0 0.0
      %902 = vmatpush1.msra.mxu0 0.0
      %903 = vmatprep.subr.mxu0 0.0
      %904 = vmatpush1.msra.mxu0 0.0
      %905 = vmatprep.subr.mxu0 0.0
      %906 = vmatpush1.msra.mxu0 0.0
      %907 = vmatprep.subr.mxu0 0.0
      %908 = vmatpush1.msra.mxu0 0.0
      %909 = vmatprep.subr.mxu0 0.0
      %910 = vmatpush1.msra.mxu0 0.0
      %911 = vmatprep.subr.mxu0 0.0
      %912 = vmatpush1.msra.mxu0 0.0
      %913 = vmatprep.subr.mxu0 0.0
      %914 = vmatpush1.msra.mxu0 0.0
      %915 = vmatprep.subr.mxu0 0.0
      %916 = vmatpush1.msra.mxu0 0.0
      %917 = vmatprep.subr.mxu0 0.0
      %918 = vmatpush1.msra.mxu0 0.0
      %919 = vmatprep.subr.mxu0 0.0
      %920 = vmatpush1.msra.mxu0 0.0
      %921 = vmatprep.subr.mxu0 0.0
      %922 = vmatpush1.msra.mxu0 0.0
      %923 = vmatprep.subr.mxu0 0.0
      %924 = vmatpush1.msra.mxu0 0.0
      %925 = vmatprep.mubr.f32.mxu0 0.0
      %926 = vmatmul.mubr.f32.gmra.mrb[0].mxu0 %v643
      %v927 = vpop.f32.mrb[0].mxu0
      %v928 = vadd.f32 0.0, %v927
      %v929 = vpop.f32.mrb[0].mxu0
      %930 = vdwg.mxu0
      %v931 = vadd.f32 %v789, %v858
      %v932 = vadd.f32 %v790, %v928
      %933 = vst [vmem:[%s333] sm:$0x1] %v931
      %934 = vst [vmem:[%s333 + $0x1] sm:$0x1] %v932
      %s935 = sadd.s32 %s21, %s22
      %s936 = smul.u32 2, %s935
      %p937 = scmp.lt.s32.totalorder %s936, 3
      %s938 = scalar_select %p937, %s936, 3
      %s939 = scalar_lea.vmem %s3, %s938
      %s940 = sadd.s32 %s21, %s22
      %s941 = smul.u32 2, %s940
      %p942 = scmp.lt.s32.totalorder %s941, 3
      %s943 = scalar_select %p942, %s941, 3
      %s944 = scalar_lea.vmem %s4, %s943
      // Predicated region
      $region37: #{geo_consistency_loss.1} parent=31 // pred_check
        %p945 = pneg %p141
      $region38: #{geo_consistency_loss.1} parent=31 // pred_check_branch
        %947 = sbr.rel (%p945) target = $region40
      $region39: #{geo_consistency_loss.1} parent=31 // pred_region
        %s948 = sadd.s32 %s21, %s22
        %s949 = smul.u32 2, %s948
      $region40: #{geo_consistency_loss.1} parent=31 // pred_fallthru
        _
      // Predicated region
      $region41: #{geo_consistency_loss.1} parent=31 // pred_check
        %p950 = pneg %p169
      $region42: #{geo_consistency_loss.1} parent=31 // pred_check_branch
        %952 = sbr.rel (%p950) target = $region44
      $region43: #{geo_consistency_loss.1} parent=31 // pred_region
        %s953 = sadd.s32 %s21, %s22
        %s954 = smul.u32 2, %s953
      $region44: #{geo_consistency_loss.1} parent=31 // pred_fallthru
        _
    $region32: #{geo_consistency_loss.1} parent=5 // pred_fallthru
      _
    %p955 = scmp.le.s32.totalorder 2, %s11
    // Predicated region
    $region45: #{geo_consistency_loss.1} parent=5 // pred_check
      %p956 = pneg %p955
    $region46: #{geo_consistency_loss.1} parent=5 // pred_check_branch
      %958 = sbr.rel (%p956) target = $region48
    $region47: #{geo_consistency_loss.1} parent=5 // pred_region
      %s959 = ssub.s32 %s11, 2
      // Predicated region
      $region49: #{geo_consistency_loss.1} parent=47 // pred_check
        %p960 = pneg %p147
      $region50: #{geo_consistency_loss.1} parent=47 // pred_check_branch
        %962 = sbr.rel (%p960) target = $region52
      $region51: #{geo_consistency_loss.1} parent=47 // pred_region
        %s963 = sadd.s32 %s24, %s25
        %s964 = smul.u32 2, %s963
        %p965 = scmp.lt.s32.totalorder %s964, 3
        %s966 = scalar_select %p965, %s964, 3
        %s967 = scalar_lea.vmem %s3, %s966
      $region52: #{geo_consistency_loss.1} parent=47 // pred_fallthru
        _
      // Predicated region
      $region53: #{geo_consistency_loss.1} parent=47 // pred_check
        %p968 = pneg %p175
      $region54: #{geo_consistency_loss.1} parent=47 // pred_check_branch
        %970 = sbr.rel (%p968) target = $region56
      $region55: #{geo_consistency_loss.1} parent=47 // pred_region
        %s971 = sadd.s32 %s24, %s25
        %s972 = smul.u32 2, %s971
        %p973 = scmp.lt.s32.totalorder %s972, 3
        %s974 = scalar_select %p973, %s972, 3
        %s975 = scalar_lea.vmem %s4, %s974
      $region56: #{geo_consistency_loss.1} parent=47 // pred_fallthru
        _
    $region48: #{geo_consistency_loss.1} parent=5 // pred_fallthru
      _
  $region6: #{geo_consistency_loss.1} parent=0 // loop_footer
    %s15 = sadd.s32 1, %s11
  $region7: #{geo_consistency_loss.1} parent=0 // loop_footer_branch
    %10 = sbr.rel target = $region3
  $region8: #{geo_consistency_loss.1} parent=0 // loop_exit
    _

</llo_original>
